<compile_context>
chip_gen: v6e
topology: v6e:2x2x1
jax: 0.10.0
libtpu: 0.0.40
codegen_flags: <defaults>
</compile_context>

<pallas_src>
import functools

import jax
import jax.numpy as jnp
from jax.experimental import pallas as pl
from jax.experimental.pallas import tpu as pltpu


def _cdiv(a, b):
    return -(-a // b)


def _round_up(x, m):
    return _cdiv(x, m) * m


def _pick_tiling(dim, max_block, align, min_steps=1):
    """Choose (tile, padded_dim, num_steps) with tile a multiple of `align`.

    Pads only to `align` first, then to a multiple of the chosen tile, so the
    waste is bounded by the alignment, not a whole max_block.
    """
    dim_al = _round_up(dim, align)
    steps = max(_cdiv(dim_al, max_block), min_steps)
    steps = max(1, min(steps, dim_al // align))
    tile = _round_up(_cdiv(dim_al, steps), align)
    padded = _round_up(dim_al, tile)
    return tile, padded, padded // tile


def _linear_single_k_kernel(x_ref, w_ref, b_ref, o_ref, *, cast_bf16):
    # Whole K in one block: no accumulator scratch, bias folded into the store.
    x = x_ref[...]
    if cast_bf16:
        x = x.astype(jnp.bfloat16)
    acc = jnp.dot(x, w_ref[...], preferred_element_type=jnp.float32)
    o_ref[...] = (acc + b_ref[...]).astype(o_ref.dtype)


def _linear_multi_k_kernel(x_ref, w_ref, b_ref, o_ref, *scratch,
                           tk, w_resident, cast_bf16):
    # K tiled on the last grid axis.  If the output dtype is f32 there is no
    # scratch and o_ref itself is the resident accumulator.
    acc_ref = scratch[0] if scratch else o_ref
    k = pl.program_id(2)

    @pl.when(k == 0)
    def _():
        # Fold the bias into the accumulator init (replaces zero-fill + add).
        acc_ref[...] = b_ref[...] + jnp.zeros_like(acc_ref)

    x = x_ref[...]
    if cast_bf16:
        x = x.astype(jnp.bfloat16)

    if w_resident:
        # Whole (padded) weight stays in VMEM; slice the K block in-kernel.
        off = pl.multiple_of(k * tk, 128)
        w = w_ref[pl.ds(off, tk), :]
    else:
        w = w_ref[...]

    acc_ref[...] += jnp.dot(x, w, preferred_element_type=jnp.float32)

    if scratch:
        @pl.when(k == pl.num_programs(2) - 1)
        def _():
            o_ref[...] = acc_ref[...].astype(o_ref.dtype)


_W_RESIDENT_BYTES = 4 * 1024 * 1024       # keep weight resident below this
_SCOPED_VMEM_DEFAULT = 32 * 1024 * 1024   # Mosaic scoped-VMEM default
_VMEM_CAP = 64 * 1024 * 1024              # v7x physical VMEM per TC


@functools.partial(
    jax.jit,
    static_argnames=("block_m", "block_n", "block_k", "cast_to_bf16",
                     "xla_fallback_elems"),
)
def linear_probe_forward(
    features,      # [B, F]
    weight,        # [F, C]  == W^T relative to PyTorch's nn.Linear [C, F]
    bias,          # [C]
    *,
    block_m=512,
    block_n=512,
    block_k=1024,
    cast_to_bf16=False,
    xla_fallback_elems=0,
):
    B, F = features.shape
    C = weight.shape[1]
    out_dtype = features.dtype

    # Tiny-shape escape hatch (disabled by default so the demo uses the kernel).
    if xla_fallback_elems and B * F <= xla_fallback_elems:
        return (features @ weight.astype(features.dtype)
                + bias.astype(features.dtype)).astype(out_dtype)

    row_align = 16 if jnp.dtype(out_dtype).itemsize == 2 else 8

    # >=2 M steps when the batch allows it -> both v7x TensorCores get work.
    tm, B_p, n_m = _pick_tiling(B, block_m, row_align, min_steps=2)
    tn, C_p, n_n = _pick_tiling(C, block_n, 128)
    tk, F_p, n_k = _pick_tiling(F, block_k, 128)

    # Activations: pad only when actually needed (zeros keep the math exact);
    # never cast in the wrapper (would be an extra full HBM pass over x).
    x = features
    if (B_p, F_p) != (B, F):
        x = jnp.pad(x, ((0, B_p - B), (0, F_p - F)))

    # Weight / bias are tiny; padding & casting them in the wrapper is cheap.
    w_dtype = jnp.bfloat16 if cast_to_bf16 else features.dtype
    w = weight.astype(w_dtype)
    if (F_p, C_p) != (F, C):
        w = jnp.pad(w, ((0, F_p - F), (0, C_p - C)))
    b2 = jnp.pad(bias.astype(jnp.float32), (0, C_p - C)).reshape(1, C_p)

    cast_bf16_in_kernel = bool(cast_to_bf16) and features.dtype != jnp.bfloat16

    if n_k == 1:
        # -------- single K block: 2-D grid, no accumulator ----------------
        kernel = functools.partial(_linear_single_k_kernel,
                                   cast_bf16=cast_bf16_in_kernel)
        grid = (n_m, n_n)
        in_specs = [
            pl.BlockSpec((tm, F_p), lambda i, j: (i, 0)),
            pl.BlockSpec((F_p, tn), lambda i, j: (0, j)),
            pl.BlockSpec((1, tn), lambda i, j: (0, j)),
        ]
        out_specs = pl.BlockSpec((tm, tn), lambda i, j: (i, j))
        scratch_shapes = []
        sem = ("parallel", "parallel")
        w_vmem_rows = F_p
    else:
        # -------- K tiled on the last (reduction) grid axis ---------------
        w_resident = F_p * tn * jnp.dtype(w_dtype).itemsize <= _W_RESIDENT_BYTES
        need_scratch = jnp.dtype(out_dtype) != jnp.dtype(jnp.float32)
        kernel = functools.partial(_linear_multi_k_kernel, tk=tk,
                                   w_resident=w_resident,
                                   cast_bf16=cast_bf16_in_kernel)
        grid = (n_m, n_n, n_k)
        if w_resident:
            w_spec = pl.BlockSpec((F_p, tn), lambda i, j, k: (0, j))
            w_vmem_rows = F_p
        else:
            w_spec = pl.BlockSpec((tk, tn), lambda i, j, k: (k, j))
            w_vmem_rows = tk
        in_specs = [
            pl.BlockSpec((tm, tk), lambda i, j, k: (i, k)),
            w_spec,
            pl.BlockSpec((1, tn), lambda i, j, k: (0, j)),
        ]
        out_specs = pl.BlockSpec((tm, tn), lambda i, j, k: (i, j))
        scratch_shapes = (
            [pltpu.VMEM((tm, tn), jnp.float32)] if need_scratch else []
        )
        sem = ("parallel", "parallel", "arbitrary")

    # VMEM budget (double-buffered operands); set an explicit limit only when
    # the estimate exceeds the scoped default, and never above v7x's 64 MiB.
    tk_x = F_p if n_k == 1 else tk
    est_vmem = (
        2 * tm * tk_x * x.dtype.itemsize
        + 2 * w_vmem_rows * tn * jnp.dtype(w_dtype).itemsize
        + 2 * tn * 4
        + 2 * tm * tn * jnp.dtype(out_dtype).itemsize
        + (tm * tn * 4 if scratch_shapes else 0)
    )
    cp_kwargs = dict(dimension_semantics=sem)
    if est_vmem > _SCOPED_VMEM_DEFAULT:
        cp_kwargs["vmem_limit_bytes"] = min(
            int(est_vmem * 1.25) + (1 << 20), _VMEM_CAP
        )

    out_padded = pl.pallas_call(
        kernel,
        out_shape=jax.ShapeDtypeStruct((B_p, C_p), out_dtype),
        grid_spec=pltpu.PrefetchScalarGridSpec(
            num_scalar_prefetch=0,
            grid=grid,
            in_specs=in_specs,
            out_specs=out_specs,
            scratch_shapes=scratch_shapes,
        ),
        compiler_params=pltpu.CompilerParams(**cp_kwargs),
    )(x, w, b2)

    if (B_p, C_p) != (B, C):
        out_padded = out_padded[:B, :C]
    return out_padded


if __name__ == "__main__":
    key = jax.random.PRNGKey(0)
    k_x, k_w, k_b, k_x2, k_w2, k_b2 = jax.random.split(key, 6)

    # ---- case 1: module-default small shapes (single-K path) -------------
    batch, in_features, num_classes = 8, 32, 16
    bound = 1.0 / (in_features ** 0.5)
    weight_t = jax.random.uniform(
        k_w, (in_features, num_classes), jnp.float32, -bound, bound)
    bias = jax.random.uniform(k_b, (num_classes,), jnp.float32, -bound, bound)
    features = jax.random.normal(k_x, (batch, in_features), jnp.float32)
    ref = features @ weight_t + bias

    out = jax.block_until_ready(linear_probe_forward(features, weight_t, bias))
    assert out.shape == (batch, num_classes)
    assert jnp.allclose(out, ref, atol=1e-5, rtol=1e-5), "f32 single-K mismatch"

    out_bf = jax.block_until_ready(
        linear_probe_forward(features, weight_t, bias, cast_to_bf16=True))
    assert jnp.allclose(out_bf, ref, atol=5e-2, rtol=5e-2), "bf16 single-K mismatch"

    # ---- case 2: multi-K path (accumulate directly into f32 output) ------
    batch2, in_features2, num_classes2 = 64, 256, 10
    bound2 = 1.0 / (in_features2 ** 0.5)
    weight_t2 = jax.random.uniform(
        k_w2, (in_features2, num_classes2), jnp.float32, -bound2, bound2)
    bias2 = jax.random.uniform(k_b2, (num_classes2,), jnp.float32, -bound2, bound2)
    features2 = jax.random.normal(k_x2, (batch2, in_features2), jnp.float32)
    ref2 = features2 @ weight_t2 + bias2

    out2 = jax.block_until_ready(
        linear_probe_forward(features2, weight_t2, bias2, block_k=128))
    assert out2.shape == (batch2, num_classes2)
    assert jnp.allclose(out2, ref2, atol=1e-3, rtol=1e-3), "f32 multi-K mismatch"

    # ---- case 3: bf16 activations -> scratch accumulator + bf16 store ----
    f_bf16 = features2.astype(jnp.bfloat16)
    ref3 = f_bf16.astype(jnp.float32) @ weight_t2 + bias2
    out3 = jax.block_until_ready(
        linear_probe_forward(f_bf16, weight_t2, bias2,
                             block_k=128, cast_to_bf16=True))
    assert out3.dtype == jnp.bfloat16
    assert jnp.allclose(out3.astype(jnp.float32), ref3,
                        atol=5e-2, rtol=5e-2), "bf16 multi-K mismatch"

    print("KERNEL_OK")
</pallas_src>

<mosaic_0001>
module attributes {stable_mosaic.version = 11 : i64} {
  func.func @_linear_single_k_kernel(%arg0: i32, %arg1: i32, %arg2: memref<8x128xf32, #tpu.memory_space<vmem>>, %arg3: memref<128x128xf32, #tpu.memory_space<vmem>>, %arg4: memref<1x128xf32, #tpu.memory_space<vmem>>, %arg5: memref<8x128xf32, #tpu.memory_space<vmem>>) attributes {dimension_semantics = [#tpu.dimension_semantics<parallel>, #tpu.dimension_semantics<parallel>], iteration_bounds = array<i64: 1, 1>, scalar_prefetch = 0 : i64, scratch_operands = 0 : i64, tpu.core_type = #tpu.core_type<tc>, window_params = [{transform_indices = @transform_0, window_bounds = array<i64: 8, 128>}, {transform_indices = @transform_1, window_bounds = array<i64: 128, 128>}, {transform_indices = @transform_2, window_bounds = array<i64: 1, 128>}, {transform_indices = @transform_3, window_bounds = array<i64: 8, 128>}]} {
    %c0 = arith.constant 0 : index
    %c0_0 = arith.constant 0 : index
    %0 = vector.load %arg2[%c0, %c0_0] : memref<8x128xf32, #tpu.memory_space<vmem>>, vector<8x128xf32>
    %c0_1 = arith.constant 0 : index
    %c0_2 = arith.constant 0 : index
    %1 = vector.load %arg3[%c0_1, %c0_2] : memref<128x128xf32, #tpu.memory_space<vmem>>, vector<128x128xf32>
    %cst = arith.constant dense<0.000000e+00> : vector<8x128xf32>
    %2 = tpu.matmul %0, %1, %cst {dimension_numbers = #tpu.dot_dimension_numbers<[1], [0], [0], [1], [0, 0, 1, 1], [], []>} : vector<8x128xf32>, vector<128x128xf32>, vector<8x128xf32> -> vector<8x128xf32>
    %c0_3 = arith.constant 0 : index
    %c0_4 = arith.constant 0 : index
    %3 = vector.load %arg4[%c0_3, %c0_4] : memref<1x128xf32, #tpu.memory_space<vmem>>, vector<1x128xf32>
    %4 = vector.broadcast %3 : vector<1x128xf32> to vector<8x128xf32>
    %5 = arith.addf %2, %4 : vector<8x128xf32>
    %c0_5 = arith.constant 0 : index
    %c0_6 = arith.constant 0 : index
    %6 = vector.load %arg5[%c0_5, %c0_6] : memref<8x128xf32, #tpu.memory_space<vmem>>, vector<8x128xf32>
    tpu.vector_store %arg5[%c0_5, %c0_6], %5 {strides = array<i32>} : memref<8x128xf32, #tpu.memory_space<vmem>>, vector<8x128xf32>,
    return
  }
  func.func @transform_0(%arg0: i32, %arg1: i32) -> (i32, i32) {
    %c0_i32 = arith.constant 0 : i32
    %c0_i32_0 = arith.constant 0 : i32
    return %arg0, %c0_i32 : i32, i32
  }
  func.func @transform_1(%arg0: i32, %arg1: i32) -> (i32, i32) {
    %c0_i32 = arith.constant 0 : i32
    %c0_i32_0 = arith.constant 0 : i32
    return %c0_i32, %arg1 : i32, i32
  }
  func.func @transform_2(%arg0: i32, %arg1: i32) -> (i32, i32) {
    %c0_i32 = arith.constant 0 : i32
    %c0_i32_0 = arith.constant 0 : i32
    return %c0_i32, %arg1 : i32, i32
  }
  func.func @transform_3(%arg0: i32, %arg1: i32) -> (i32, i32) {
    %c0_i32 = arith.constant 0 : i32
    return %arg0, %arg1 : i32, i32
  }
}

</mosaic_0001>

<llo_original>
// kernel: linear_probe_forward.1
$region0: #{linear_probe_forward.1}
  #allocation0 [shape = 'u32[]', space=smem, size = 0x4, offset = 0x4, fixed_abs, tag = 'smem constant byte address 0x4 - core index']
  #allocation1 [shape = 'u32[144,128]{1,0:T(1,128)}', space=vmem, size = 0x12000, scoped, tag = 'internal scratch']
  %s0 = inlined_call_operand.vmem [shape: f32[8,128], index: 0, kind: input, shape index: {}]
  %s1 = inlined_call_operand.vmem [shape: f32[128,128], index: 1, kind: input, shape index: {}]
  %s2 = inlined_call_operand.vmem [shape: f32[1,128], index: 2, kind: input, shape index: {}]
  %s3 = inlined_call_operand.hbm [shape: f32[8,128], index: 3, kind: output, shape index: {}]
  %s4 = sld [smem:[#allocation0]]
  $region22: #{linear_probe_forward.1} parent=0
    _
  %s6 = ssub.s32 1, %s4
  %s7 = scalar_select 0, %s6, %s4
  $region1: #{linear_probe_forward.1} parent=0
    #allocation2 [shape = 'u8[4096]{0}', space=vmem, size = 0x1000, scoped, tag = 'output window, operand 0, single buffered']
    #allocation3 [shape = 's32[1]{0}', space=sflag, size = 0x4, scoped, tag = 'scoped memory for linear_probe_forward.1']
    %8 = vsyncpa [#allocation3], 0
    // Predicated region
    $region2: #{linear_probe_forward.1} parent=1 // pred_check
      _
    $region3: #{linear_probe_forward.1} parent=1 // pred_check_branch
      %10 = sbr.rel (0) target = $region5
    $region4: #{linear_probe_forward.1} parent=1 // pred_region
      _
    $region5: #{linear_probe_forward.1} parent=1 // pred_fallthru
      _
    // Predicated region
    $region6: #{linear_probe_forward.1} parent=1 // pred_check
      _
    $region7: #{linear_probe_forward.1} parent=1 // pred_check_branch
      %12 = sbr.rel (0) target = $region9
    $region8: #{linear_probe_forward.1} parent=1 // pred_region
      _
    $region9: #{linear_probe_forward.1} parent=1 // pred_fallthru
      _
    // Predicated region
    $region10: #{linear_probe_forward.1} parent=1 // pred_check
      _
    $region11: #{linear_probe_forward.1} parent=1 // pred_check_branch
      %14 = sbr.rel (0) target = $region13
    $region12: #{linear_probe_forward.1} parent=1 // pred_region
      _
    $region13: #{linear_probe_forward.1} parent=1 // pred_fallthru
      _
    %v15 = vld [vmem:[%s0] sm:$0xff]
    %v16 = vld [vmem:[%s1] sm:$0xff]
    %v17 = vld [vmem:[%s1 + $0x8] sm:$0xff]
    %v18 = vld [vmem:[%s1 + $0x10] sm:$0xff]
    %v19 = vld [vmem:[%s1 + $0x18] sm:$0xff]
    %v20 = vld [vmem:[%s1 + $0x20] sm:$0xff]
    %v21 = vld [vmem:[%s1 + $0x28] sm:$0xff]
    %v22 = vld [vmem:[%s1 + $0x30] sm:$0xff]
    %v23 = vld [vmem:[%s1 + $0x38] sm:$0xff]
    %v24 = vld [vmem:[%s1 + $0x40] sm:$0xff]
    %v25 = vld [vmem:[%s1 + $0x48] sm:$0xff]
    %v26 = vld [vmem:[%s1 + $0x50] sm:$0xff]
    %v27 = vld [vmem:[%s1 + $0x58] sm:$0xff]
    %v28 = vld [vmem:[%s1 + $0x60] sm:$0xff]
    %v29 = vld [vmem:[%s1 + $0x68] sm:$0xff]
    %v30 = vld [vmem:[%s1 + $0x70] sm:$0xff]
    %v31 = vld [vmem:[%s1 + $0x78] sm:$0xff]
    %v32 = vld [vmem:[%s2] sm:$0x1]
    %v34 = vlaneseq
    %v35 = vshrl.u32 %v34, 7
    %v36 = vsub.s32 0, %v35
    %v37 = vrot.slane %v32, %v36
    %39 = vmatprep.subr.mxu0 0.0
    %40 = vmatpush1.msra.mxu0 %v31
    %41 = vmatprep.subr.mxu0 0.0
    %42 = vmatpush1.msra.mxu0 %v30
    %43 = vmatprep.subr.mxu0 0.0
    %44 = vmatpush1.msra.mxu0 %v29
    %45 = vmatprep.subr.mxu0 0.0
    %46 = vmatpush1.msra.mxu0 %v28
    %47 = vmatprep.subr.mxu0 0.0
    %48 = vmatpush1.msra.mxu0 %v27
    %49 = vmatprep.subr.mxu0 0.0
    %50 = vmatpush1.msra.mxu0 %v26
    %51 = vmatprep.subr.mxu0 0.0
    %52 = vmatpush1.msra.mxu0 %v25
    %53 = vmatprep.subr.mxu0 0.0
    %54 = vmatpush1.msra.mxu0 %v24
    %55 = vmatprep.subr.mxu0 0.0
    %56 = vmatpush1.msra.mxu0 %v23
    %57 = vmatprep.subr.mxu0 0.0
    %58 = vmatpush1.msra.mxu0 %v22
    %59 = vmatprep.subr.mxu0 0.0
    %60 = vmatpush1.msra.mxu0 %v21
    %61 = vmatprep.subr.mxu0 0.0
    %62 = vmatpush1.msra.mxu0 %v20
    %63 = vmatprep.subr.mxu0 0.0
    %64 = vmatpush1.msra.mxu0 %v19
    %65 = vmatprep.subr.mxu0 0.0
    %66 = vmatpush1.msra.mxu0 %v18
    %67 = vmatprep.subr.mxu0 0.0
    %68 = vmatpush1.msra.mxu0 %v17
    %69 = vmatprep.subr.mxu0 0.0
    %70 = vmatpush1.msra.mxu0 %v16
    %71 = vmatprep.subr.mxu0 0.0
    %72 = vmatpush2.msra.mxu0 0.0
    %73 = vmatprep.subr.mxu0 0.0
    %74 = vmatpush2.msra.mxu0 0.0
    %75 = vmatprep.subr.mxu0 0.0
    %76 = vmatpush2.msra.mxu0 0.0
    %77 = vmatprep.subr.mxu0 0.0
    %78 = vmatpush2.msra.mxu0 0.0
    %79 = vmatprep.subr.mxu0 0.0
    %80 = vmatpush2.msra.mxu0 0.0
    %81 = vmatprep.subr.mxu0 0.0
    %82 = vmatpush2.msra.mxu0 0.0
    %83 = vmatprep.subr.mxu0 0.0
    %84 = vmatpush2.msra.mxu0 0.0
    %85 = vmatprep.subr.mxu0 0.0
    %86 = vmatpush2.msra.mxu0 0.0
    %87 = vmatprep.subr.mxu0 0.0
    %88 = vmatpush2.msra.mxu0 0.0
    %89 = vmatprep.subr.mxu0 0.0
    %90 = vmatpush2.msra.mxu0 0.0
    %91 = vmatprep.subr.mxu0 0.0
    %92 = vmatpush2.msra.mxu0 0.0
    %93 = vmatprep.subr.mxu0 0.0
    %94 = vmatpush2.msra.mxu0 0.0
    %95 = vmatprep.subr.mxu0 0.0
    %96 = vmatpush2.msra.mxu0 0.0
    %97 = vmatprep.subr.mxu0 0.0
    %98 = vmatpush2.msra.mxu0 0.0
    %99 = vmatprep.subr.mxu0 0.0
    %100 = vmatpush2.msra.mxu0 0.0
    %101 = vmatprep.subr.mxu0 0.0
    %102 = vmatpush2.msra.mxu0 0.0
    %103 = vmatprep.mubr.f32.mxu0 0.0
    %104 = vmatmul.mubr.f32.gmra.mxu0 %v15
    %v105 = vpop.f32.mrf.mxu0
    %v106 = vadd.f32 %v37, %v105
    %v107 = vpop.f32.mrf.mxu0
    %108 = vdwg.mxu0
    %109 = vst [vmem:[#allocation2] sm:$0xff] %v106
    // Predicated region
    $region14: #{linear_probe_forward.1} parent=1 // pred_check
      _
    $region15: #{linear_probe_forward.1} parent=1 // pred_check_branch
      %111 = sbr.rel (0) target = $region17
    $region16: #{linear_probe_forward.1} parent=1 // pred_region
      %s113 = ssub.s32 128, 128
      %114 = vsyncadd [#allocation3], %s113
      %s116 = sshll.u32 [#allocation2], 4
      %s117 = int_to_ptr.vmem [resolvable:$true] %s116
      %119 = dma.vmem_to_hbm [thread:$0]  %s117, 128, %s3, [#allocation3]
    $region17: #{linear_probe_forward.1} parent=1 // pred_fallthru
      _
    // Predicated region
    $region18: #{linear_probe_forward.1} parent=1 // pred_check
      _
    $region19: #{linear_probe_forward.1} parent=1 // pred_check_branch
      %121 = sbr.rel (0) target = $region21
    $region20: #{linear_probe_forward.1} parent=1 // pred_region
      %122 = dma.done [#allocation3], 128
    $region21: #{linear_probe_forward.1} parent=1 // pred_fallthru
      _
    %123 = vsyncpa [#allocation3], 1

</llo_original>
